<compile_context>
chip_gen: v7x
topology: tpu7x:2x2x1
jax: 0.10.0
libtpu: 0.0.40
codegen_flags: <defaults>
</compile_context>

<pallas_src>
import functools
import math

import jax
import jax.numpy as jnp
from jax.experimental import pallas as pl
from jax.experimental.pallas import tpu as pltpu


def _round_up(x, m):
    return ((x + m - 1) // m) * m


def _classifier_kernel(num_extra_layers, *refs):
    """Fused feature-build + MLP + classifier head (BN pre-folded into weights).

    refs order:
      pre, hyp,
      w1a, w1b, w1c, w1d, b1,                 # first MLP layer, weight split by feature group
      (w_i, b_i) for i in range(num_extra_layers),
      w_clf, b_clf,                           # head (padded to 128 lanes for compute)
      out_ref                                 # (tile_b, num_classes) f32
    Weights are (in_features, out_features), typically bf16.  Biases are f32 (1, F).
    """
    it = iter(refs)
    pre_ref = next(it)
    hyp_ref = next(it)
    w1_refs = [next(it) for _ in range(4)]
    b1_ref = next(it)
    extra_refs = [(next(it), next(it)) for _ in range(num_extra_layers)]
    w_clf_ref = next(it)
    b_clf_ref = next(it)
    out_ref = next(it)

    wdt = w1_refs[0].dtype  # MXU operand dtype (bf16 by default)

    pre_raw = pre_ref[...]
    hyp_raw = hyp_ref[...]
    # Feature build in f32 on the VPU (v5e has no bf16 VPU path).
    pre_f = pre_raw.astype(jnp.float32)
    hyp_f = hyp_raw.astype(jnp.float32)
    f3 = jnp.abs(pre_f - hyp_f)
    f4 = pre_f * hyp_f

    # First layer: split matmul instead of lane-axis concat.  Four K=H dots
    # accumulate into one f32 result -> no relayout / masked-store traffic.
    acc = jnp.dot(pre_raw.astype(wdt), w1_refs[0][...], preferred_element_type=jnp.float32)
    acc += jnp.dot(hyp_raw.astype(wdt), w1_refs[1][...], preferred_element_type=jnp.float32)
    acc += jnp.dot(f3.astype(wdt), w1_refs[2][...], preferred_element_type=jnp.float32)
    acc += jnp.dot(f4.astype(wdt), w1_refs[3][...], preferred_element_type=jnp.float32)
    x = jnp.maximum(acc + b1_ref[...], 0.0)  # ReLU, f32

    # Remaining MLP layers.
    for w_ref, b_ref in extra_refs:
        y = jnp.dot(x.astype(w_ref.dtype), w_ref[...], preferred_element_type=jnp.float32)
        x = jnp.maximum(y + b_ref[...], 0.0)

    # Classifier head: lane-dense (128-col padded) compute, narrow store.
    logits = jnp.dot(x.astype(w_clf_ref.dtype), w_clf_ref[...],
                     preferred_element_type=jnp.float32) + b_clf_ref[...]
    num_classes = out_ref.shape[1]
    out_ref[...] = logits[:, :num_classes].astype(out_ref.dtype)


def _fold_and_pack_params(params, *, use_batchnorm, weights_dtype):
    """Folds eval-mode BN into adjacent Linears, splits W1, pads the head weight."""
    mlp = [(jnp.asarray(w, jnp.float32), jnp.asarray(b, jnp.float32))
           for (w, b) in params["mlp"]]
    w1, b1 = mlp[0]
    clf_w = jnp.asarray(params["clf_w"], jnp.float32)
    clf_b = jnp.asarray(params["clf_b"], jnp.float32)

    if use_batchnorm:
        # BN(eval): y = x * s + t  (per feature).  Fold into the next Linear:
        #   (x*s + t) @ W + b = x @ (s[:,None]*W) + (t @ W + b)
        s_in = params["bn_in_scale"].reshape(-1)
        t_in = params["bn_in_shift"].reshape(-1)
        b1 = b1 + (t_in @ w1)[None, :]
        w1 = s_in[:, None] * w1

        s_out = params["bn_out_scale"].reshape(-1)
        t_out = params["bn_out_shift"].reshape(-1)
        clf_b = clf_b + (t_out @ clf_w)[None, :]
        clf_w = s_out[:, None] * clf_w

    four_h = w1.shape[0]
    assert four_h % 4 == 0
    H = four_h // 4
    w1_blocks = [w1[i * H:(i + 1) * H, :] for i in range(4)]

    # Lane-dense head weight for the in-kernel matmul only (output stays narrow).
    num_classes = clf_w.shape[1]
    padded_classes = max(128, _round_up(num_classes, 128))
    if padded_classes != num_classes:
        clf_w = jnp.pad(clf_w, ((0, 0), (0, padded_classes - num_classes)))
        clf_b = jnp.pad(clf_b, ((0, 0), (0, padded_classes - num_classes)))

    # Weights go to bf16 (MXU-native); biases stay f32.
    w1_blocks = [w.astype(weights_dtype) for w in w1_blocks]
    extra = [(w.astype(weights_dtype), b) for (w, b) in mlp[1:]]
    clf_w = clf_w.astype(weights_dtype)

    return w1_blocks, b1, extra, clf_w, clf_b, num_classes, padded_classes


def classifier_forward(pre, hyp, params, *, use_batchnorm, tile_b=None,
                       weights_dtype=jnp.bfloat16, inputs_dtype=jnp.bfloat16):
    """Runs the Classifier forward pass as a single Pallas kernel, tiled over batch."""
    B, H_in = pre.shape
    assert hyp.shape == (B, H_in)

    (w1_blocks, b1, extra, clf_w, clf_b,
     num_classes, _padded_classes) = _fold_and_pack_params(
        params, use_batchnorm=use_batchnorm, weights_dtype=weights_dtype)
    assert w1_blocks[0].shape[0] == H_in
    num_extra_layers = len(extra)
    clf_hidden = w1_blocks[0].shape[1]

    # Halve input HBM reads: stream pre/hyp in bf16; the kernel upcasts to f32
    # for the elementwise feature build.
    pre_in = pre.astype(inputs_dtype)
    hyp_in = hyp.astype(inputs_dtype)

    # Batch tiling: no wrapper-side padding (Pallas masks the ragged last
    # block).  Default tile targets >=2 grid steps (megacore / two v7x TCs)
    # while capping at 512 rows per tile.
    if tile_b is None:
        tile_b = min(512, _round_up(max(1, pl.cdiv(B, 2)), 8))
    tile_b = max(8, _round_up(tile_b, 8))
    grid = (pl.cdiv(B, tile_b),)

    operands = [pre_in, hyp_in]
    specs = [
        pl.BlockSpec((tile_b, H_in), lambda i: (i, 0)),
        pl.BlockSpec((tile_b, H_in), lambda i: (i, 0)),
    ]

    def _full(arr):
        # Whole-array block, constant index map -> loaded once, resident across
        # grid steps (no per-step re-DMA of weights).
        operands.append(arr)
        specs.append(pl.BlockSpec(arr.shape, lambda i, _nd=arr.ndim: (0,) * _nd))

    for w in w1_blocks:
        _full(w)
    _full(b1)
    for w, b in extra:
        _full(w)
        _full(b)
    _full(clf_w)
    _full(clf_b)

    kernel = functools.partial(_classifier_kernel, num_extra_layers)

    # Advisory cost estimate so XLA can overlap this small kernel with its
    # neighbors (it is tiny relative to whatever surrounds it).
    flops = 2 * B * (4 * H_in * clf_hidden
                     + num_extra_layers * clf_hidden * clf_hidden
                     + clf_hidden * num_classes)
    bytes_accessed = (sum(int(a.size) * int(a.dtype.itemsize) for a in operands)
                      + B * num_classes * 4)
    cost = pl.CostEstimate(flops=flops, transcendentals=0,
                           bytes_accessed=bytes_accessed)

    out = pl.pallas_call(
        kernel,
        out_shape=jax.ShapeDtypeStruct((B, num_classes), jnp.float32),
        grid=grid,
        in_specs=specs,
        out_specs=pl.BlockSpec((tile_b, num_classes), lambda i: (i, 0)),
        compiler_params=pltpu.CompilerParams(
            dimension_semantics=("parallel",),
        ),
        cost_estimate=cost,
    )(*operands)

    return out


def init_params(key, *, hidden_dim, clf_hidden_dim, clf_num_layers, num_classes,
                use_batchnorm, bn_eps=1e-5):
    """Deterministic parameter init mirroring Classifier.reset_parameters()."""
    params = {}
    mlp = []
    for i in range(clf_num_layers):
        in_f = clf_hidden_dim if i > 0 else 4 * hidden_dim
        key, wk = jax.random.split(key)
        # kaiming_normal_ (fan_in, gain=sqrt(2)); stored as (in, out) for the kernel.
        std = math.sqrt(2.0 / in_f)
        w = std * jax.random.normal(wk, (in_f, clf_hidden_dim), dtype=jnp.float32)
        b = jnp.zeros((1, clf_hidden_dim), dtype=jnp.float32)
        mlp.append((w, b))
    params["mlp"] = mlp

    key, ck = jax.random.split(key)
    params["clf_w"] = jax.random.uniform(
        ck, (clf_hidden_dim, num_classes), dtype=jnp.float32, minval=-0.005, maxval=0.005)
    params["clf_b"] = jnp.zeros((1, num_classes), dtype=jnp.float32)

    if use_batchnorm:
        # BatchNorm1d.reset_parameters(): gamma=1, beta=0, running_mean=0, running_var=1.
        # Eval-mode BN reduces to per-feature scale/shift.
        scale_in = jnp.full((1, 4 * hidden_dim), 1.0 / math.sqrt(1.0 + bn_eps), jnp.float32)
        params["bn_in_scale"] = scale_in
        params["bn_in_shift"] = jnp.zeros((1, 4 * hidden_dim), jnp.float32)
        scale_out = jnp.full((1, clf_hidden_dim), 1.0 / math.sqrt(1.0 + bn_eps), jnp.float32)
        params["bn_out_scale"] = scale_out
        params["bn_out_shift"] = jnp.zeros((1, clf_hidden_dim), jnp.float32)
    return params


def reference_forward(pre, hyp, params, *, use_batchnorm):
    """Pure-JAX f32 reference of the PyTorch forward (eval mode), un-folded."""
    x = jnp.concatenate([pre, hyp, jnp.abs(pre - hyp), pre * hyp], axis=1)
    if use_batchnorm:
        x = x * params["bn_in_scale"] + params["bn_in_shift"]
    for w, b in params["mlp"]:
        x = jnp.maximum(x @ w + b, 0.0)
    if use_batchnorm:
        x = x * params["bn_out_scale"] + params["bn_out_shift"]
    return x @ params["clf_w"] + params["clf_b"]


def _run_case(key, *, B, hidden_dim, clf_hidden_dim, clf_num_layers, num_classes,
              use_batchnorm, tile_b=None):
    key, kp, kh = jax.random.split(key, 3)
    pre = jax.random.normal(kp, (B, hidden_dim), dtype=jnp.float32)
    hyp = jax.random.normal(kh, (B, hidden_dim), dtype=jnp.float32)

    params = init_params(
        key,
        hidden_dim=hidden_dim,
        clf_hidden_dim=clf_hidden_dim,
        clf_num_layers=clf_num_layers,
        num_classes=num_classes,
        use_batchnorm=use_batchnorm,
    )

    logits = classifier_forward(pre, hyp, params,
                                use_batchnorm=use_batchnorm, tile_b=tile_b)
    logits = jax.block_until_ready(logits)

    ref = reference_forward(pre, hyp, params, use_batchnorm=use_batchnorm)
    assert logits.shape == (B, num_classes), logits.shape
    # bf16 inputs + bf16 weights in the kernel vs. f32 reference -> relaxed tolerance.
    assert jnp.allclose(logits, ref, atol=5e-3, rtol=5e-2), (
        "mismatch vs reference: max abs err = "
        f"{float(jnp.max(jnp.abs(logits - ref)))}")


if __name__ == "__main__":
    key = jax.random.PRNGKey(0)
    k1, k2 = jax.random.split(key)

    # Main config: hidden_dim=32 -> mlp_input dim 4*32=128, 2 MLP layers, BN on.
    _run_case(k1, B=16, hidden_dim=32, clf_hidden_dim=64, clf_num_layers=2,
              num_classes=4, use_batchnorm=True)

    # Second config: no batchnorm, single MLP layer, batch not a tile multiple
    # (exercises the ragged last grid block).
    _run_case(k2, B=10, hidden_dim=32, clf_hidden_dim=64, clf_num_layers=1,
              num_classes=3, use_batchnorm=False)

    print("KERNEL_OK")
</pallas_src>

<mosaic_0001>
module attributes {stable_mosaic.version = 11 : i64} {
  func.func @_classifier_kernel(%arg0: i32, %arg1: memref<8x32xbf16, #tpu.memory_space<vmem>>, %arg2: memref<8x32xbf16, #tpu.memory_space<vmem>>, %arg3: memref<32x64xbf16, #tpu.memory_space<vmem>>, %arg4: memref<32x64xbf16, #tpu.memory_space<vmem>>, %arg5: memref<32x64xbf16, #tpu.memory_space<vmem>>, %arg6: memref<32x64xbf16, #tpu.memory_space<vmem>>, %arg7: memref<1x64xf32, #tpu.memory_space<vmem>>, %arg8: memref<64x64xbf16, #tpu.memory_space<vmem>>, %arg9: memref<1x64xf32, #tpu.memory_space<vmem>>, %arg10: memref<64x128xbf16, #tpu.memory_space<vmem>>, %arg11: memref<1x128xf32, #tpu.memory_space<vmem>>, %arg12: memref<8x4xf32, #tpu.memory_space<vmem>>) attributes {dimension_semantics = [#tpu.dimension_semantics<parallel>], iteration_bounds = array<i64: 2>, scalar_prefetch = 0 : i64, scratch_operands = 0 : i64, tpu.core_type = #tpu.core_type<tc>, window_params = [{transform_indices = @transform_0, window_bounds = array<i64: 8, 32>}, {transform_indices = @transform_1, window_bounds = array<i64: 8, 32>}, {pipeline_mode = #tpu.pipeline_mode<synchronous>, transform_indices = @transform_2, window_bounds = array<i64: 32, 64>}, {pipeline_mode = #tpu.pipeline_mode<synchronous>, transform_indices = @transform_3, window_bounds = array<i64: 32, 64>}, {pipeline_mode = #tpu.pipeline_mode<synchronous>, transform_indices = @transform_4, window_bounds = array<i64: 32, 64>}, {pipeline_mode = #tpu.pipeline_mode<synchronous>, transform_indices = @transform_5, window_bounds = array<i64: 32, 64>}, {pipeline_mode = #tpu.pipeline_mode<synchronous>, transform_indices = @transform_6, window_bounds = array<i64: 1, 64>}, {pipeline_mode = #tpu.pipeline_mode<synchronous>, transform_indices = @transform_7, window_bounds = array<i64: 64, 64>}, {pipeline_mode = #tpu.pipeline_mode<synchronous>, transform_indices = @transform_8, window_bounds = array<i64: 1, 64>}, {pipeline_mode = #tpu.pipeline_mode<synchronous>, transform_indices = @transform_9, window_bounds = array<i64: 64, 128>}, {pipeline_mode = #tpu.pipeline_mode<synchronous>, transform_indices = @transform_10, window_bounds = array<i64: 1, 128>}, {transform_indices = @transform_11, window_bounds = array<i64: 8, 4>}]} {
    %c0 = arith.constant 0 : index
    %c0_0 = arith.constant 0 : index
    %0 = vector.load %arg1[%c0, %c0_0] : memref<8x32xbf16, #tpu.memory_space<vmem>>, vector<8x32xbf16>
    %c0_1 = arith.constant 0 : index
    %c0_2 = arith.constant 0 : index
    %1 = vector.load %arg2[%c0_1, %c0_2] : memref<8x32xbf16, #tpu.memory_space<vmem>>, vector<8x32xbf16>
    %2 = arith.extf %0 : vector<8x32xbf16> to vector<8x32xf32>
    %3 = arith.extf %1 : vector<8x32xbf16> to vector<8x32xf32>
    %4 = arith.subf %2, %3 : vector<8x32xf32>
    %5 = math.absf %4 : vector<8x32xf32>
    %6 = arith.mulf %2, %3 : vector<8x32xf32>
    %c0_3 = arith.constant 0 : index
    %c0_4 = arith.constant 0 : index
    %7 = vector.load %arg3[%c0_3, %c0_4] : memref<32x64xbf16, #tpu.memory_space<vmem>>, vector<32x64xbf16>
    %cst = arith.constant dense<0.000000e+00> : vector<8x64xf32>
    %8 = tpu.matmul %0, %7, %cst {dimension_numbers = #tpu.dot_dimension_numbers<[1], [0], [0], [1], [0, 0, 1, 1], [], []>} : vector<8x32xbf16>, vector<32x64xbf16>, vector<8x64xf32> -> vector<8x64xf32>
    %c0_5 = arith.constant 0 : index
    %c0_6 = arith.constant 0 : index
    %9 = vector.load %arg4[%c0_5, %c0_6] : memref<32x64xbf16, #tpu.memory_space<vmem>>, vector<32x64xbf16>
    %cst_7 = arith.constant dense<0.000000e+00> : vector<8x64xf32>
    %10 = tpu.matmul %1, %9, %cst_7 {dimension_numbers = #tpu.dot_dimension_numbers<[1], [0], [0], [1], [0, 0, 1, 1], [], []>} : vector<8x32xbf16>, vector<32x64xbf16>, vector<8x64xf32> -> vector<8x64xf32>
    %11 = arith.addf %8, %10 : vector<8x64xf32>
    %12 = arith.truncf %5 : vector<8x32xf32> to vector<8x32xbf16>
    %c0_8 = arith.constant 0 : index
    %c0_9 = arith.constant 0 : index
    %13 = vector.load %arg5[%c0_8, %c0_9] : memref<32x64xbf16, #tpu.memory_space<vmem>>, vector<32x64xbf16>
    %cst_10 = arith.constant dense<0.000000e+00> : vector<8x64xf32>
    %14 = tpu.matmul %12, %13, %cst_10 {dimension_numbers = #tpu.dot_dimension_numbers<[1], [0], [0], [1], [0, 0, 1, 1], [], []>} : vector<8x32xbf16>, vector<32x64xbf16>, vector<8x64xf32> -> vector<8x64xf32>
    %15 = arith.addf %11, %14 : vector<8x64xf32>
    %16 = arith.truncf %6 : vector<8x32xf32> to vector<8x32xbf16>
    %c0_11 = arith.constant 0 : index
    %c0_12 = arith.constant 0 : index
    %17 = vector.load %arg6[%c0_11, %c0_12] : memref<32x64xbf16, #tpu.memory_space<vmem>>, vector<32x64xbf16>
    %cst_13 = arith.constant dense<0.000000e+00> : vector<8x64xf32>
    %18 = tpu.matmul %16, %17, %cst_13 {dimension_numbers = #tpu.dot_dimension_numbers<[1], [0], [0], [1], [0, 0, 1, 1], [], []>} : vector<8x32xbf16>, vector<32x64xbf16>, vector<8x64xf32> -> vector<8x64xf32>
    %19 = arith.addf %15, %18 : vector<8x64xf32>
    %c0_14 = arith.constant 0 : index
    %c0_15 = arith.constant 0 : index
    %20 = vector.load %arg7[%c0_14, %c0_15] : memref<1x64xf32, #tpu.memory_space<vmem>>, vector<1x64xf32>
    %21 = vector.broadcast %20 : vector<1x64xf32> to vector<8x64xf32>
    %22 = arith.addf %19, %21 : vector<8x64xf32>
    %cst_16 = arith.constant 0.000000e+00 : f32
    %23 = vector.broadcast %cst_16 : f32 to vector<8x64xf32>
    %24 = arith.maximumf %22, %23 : vector<8x64xf32>
    %25 = arith.truncf %24 : vector<8x64xf32> to vector<8x64xbf16>
    %c0_17 = arith.constant 0 : index
    %c0_18 = arith.constant 0 : index
    %26 = vector.load %arg8[%c0_17, %c0_18] : memref<64x64xbf16, #tpu.memory_space<vmem>>, vector<64x64xbf16>
    %cst_19 = arith.constant dense<0.000000e+00> : vector<8x64xf32>
    %27 = tpu.matmul %25, %26, %cst_19 {dimension_numbers = #tpu.dot_dimension_numbers<[1], [0], [0], [1], [0, 0, 1, 1], [], []>} : vector<8x64xbf16>, vector<64x64xbf16>, vector<8x64xf32> -> vector<8x64xf32>
    %c0_20 = arith.constant 0 : index
    %c0_21 = arith.constant 0 : index
    %28 = vector.load %arg9[%c0_20, %c0_21] : memref<1x64xf32, #tpu.memory_space<vmem>>, vector<1x64xf32>
    %29 = vector.broadcast %28 : vector<1x64xf32> to vector<8x64xf32>
    %30 = arith.addf %27, %29 : vector<8x64xf32>
    %cst_22 = arith.constant 0.000000e+00 : f32
    %31 = vector.broadcast %cst_22 : f32 to vector<8x64xf32>
    %32 = arith.maximumf %30, %31 : vector<8x64xf32>
    %33 = arith.truncf %32 : vector<8x64xf32> to vector<8x64xbf16>
    %c0_23 = arith.constant 0 : index
    %c0_24 = arith.constant 0 : index
    %34 = vector.load %arg10[%c0_23, %c0_24] : memref<64x128xbf16, #tpu.memory_space<vmem>>, vector<64x128xbf16>
    %cst_25 = arith.constant dense<0.000000e+00> : vector<8x128xf32>
    %35 = tpu.matmul %33, %34, %cst_25 {dimension_numbers = #tpu.dot_dimension_numbers<[1], [0], [0], [1], [0, 0, 1, 1], [], []>} : vector<8x64xbf16>, vector<64x128xbf16>, vector<8x128xf32> -> vector<8x128xf32>
    %c0_26 = arith.constant 0 : index
    %c0_27 = arith.constant 0 : index
    %36 = vector.load %arg11[%c0_26, %c0_27] : memref<1x128xf32, #tpu.memory_space<vmem>>, vector<1x128xf32>
    %37 = vector.broadcast %36 : vector<1x128xf32> to vector<8x128xf32>
    %38 = arith.addf %35, %37 : vector<8x128xf32>
    %39 = vector.extract_strided_slice %38 {offsets = [0, 0], sizes = [8, 4], strides = [1, 1]} : vector<8x128xf32> to vector<8x4xf32>
    %c0_28 = arith.constant 0 : index
    %c0_29 = arith.constant 0 : index
    %40 = vector.load %arg12[%c0_28, %c0_29] : memref<8x4xf32, #tpu.memory_space<vmem>>, vector<8x4xf32>
    tpu.vector_store %arg12[%c0_28, %c0_29], %39 {strides = array<i32>} : memref<8x4xf32, #tpu.memory_space<vmem>>, vector<8x4xf32>,
    return
  }
  func.func @transform_0(%arg0: i32) -> (i32, i32) {
    %c0_i32 = arith.constant 0 : i32
    %c0_i32_0 = arith.constant 0 : i32
    return %arg0, %c0_i32 : i32, i32
  }
  func.func @transform_1(%arg0: i32) -> (i32, i32) {
    %c0_i32 = arith.constant 0 : i32
    %c0_i32_0 = arith.constant 0 : i32
    return %arg0, %c0_i32 : i32, i32
  }
  func.func @transform_2(%arg0: i32) -> (i32, i32) {
    %c0_i32 = arith.constant 0 : i32
    %c0_i32_0 = arith.constant 0 : i32
    %c0_i32_1 = arith.constant 0 : i32
    return %c0_i32, %c0_i32_0 : i32, i32
  }
  func.func @transform_3(%arg0: i32) -> (i32, i32) {
    %c0_i32 = arith.constant 0 : i32
    %c0_i32_0 = arith.constant 0 : i32
    %c0_i32_1 = arith.constant 0 : i32
    return %c0_i32, %c0_i32_0 : i32, i32
  }
  func.func @transform_4(%arg0: i32) -> (i32, i32) {
    %c0_i32 = arith.constant 0 : i32
    %c0_i32_0 = arith.constant 0 : i32
    %c0_i32_1 = arith.constant 0 : i32
    return %c0_i32, %c0_i32_0 : i32, i32
  }
  func.func @transform_5(%arg0: i32) -> (i32, i32) {
    %c0_i32 = arith.constant 0 : i32
    %c0_i32_0 = arith.constant 0 : i32
    %c0_i32_1 = arith.constant 0 : i32
    return %c0_i32, %c0_i32_0 : i32, i32
  }
  func.func @transform_6(%arg0: i32) -> (i32, i32) {
    %c0_i32 = arith.constant 0 : i32
    %c0_i32_0 = arith.constant 0 : i32
    %c0_i32_1 = arith.constant 0 : i32
    return %c0_i32, %c0_i32_0 : i32, i32
  }
  func.func @transform_7(%arg0: i32) -> (i32, i32) {
    %c0_i32 = arith.constant 0 : i32
    %c0_i32_0 = arith.constant 0 : i32
    %c0_i32_1 = arith.constant 0 : i32
    return %c0_i32, %c0_i32_0 : i32, i32
  }
  func.func @transform_8(%arg0: i32) -> (i32, i32) {
    %c0_i32 = arith.constant 0 : i32
    %c0_i32_0 = arith.constant 0 : i32
    %c0_i32_1 = arith.constant 0 : i32
    return %c0_i32, %c0_i32_0 : i32, i32
  }
  func.func @transform_9(%arg0: i32) -> (i32, i32) {
    %c0_i32 = arith.constant 0 : i32
    %c0_i32_0 = arith.constant 0 : i32
    %c0_i32_1 = arith.constant 0 : i32
    return %c0_i32, %c0_i32_0 : i32, i32
  }
  func.func @transform_10(%arg0: i32) -> (i32, i32) {
    %c0_i32 = arith.constant 0 : i32
    %c0_i32_0 = arith.constant 0 : i32
    %c0_i32_1 = arith.constant 0 : i32
    return %c0_i32, %c0_i32_0 : i32, i32
  }
  func.func @transform_11(%arg0: i32) -> (i32, i32) {
    %c0_i32 = arith.constant 0 : i32
    %c0_i32_0 = arith.constant 0 : i32
    return %arg0, %c0_i32 : i32, i32
  }
}

</mosaic_0001>

<llo_original>
// kernel: tpu_custom_call.1
$region0: #{tpu_custom_call.1}
  #allocation0 [shape = 'u32[]', space=smem, size = 0x4, offset = 0x4, fixed_abs, tag = 'smem constant byte address 0x4 - core index']
  #allocation1 [shape = 'u32[144,128]{1,0:T(1,128)}', space=vmem, size = 0x12000, scoped, tag = 'internal scratch']
  %s0 = inlined_call_operand.hbm [shape: bf16[16,32], index: 0, kind: input, shape index: {}]
  %s1 = inlined_call_operand.hbm [shape: bf16[16,32], index: 1, kind: input, shape index: {}]
  %s2 = inlined_call_operand.hbm [shape: bf16[32,64], index: 2, kind: input, shape index: {}]
  %s3 = inlined_call_operand.hbm [shape: bf16[32,64], index: 3, kind: input, shape index: {}]
  %s4 = inlined_call_operand.hbm [shape: bf16[32,64], index: 4, kind: input, shape index: {}]
  %s5 = inlined_call_operand.hbm [shape: bf16[32,64], index: 5, kind: input, shape index: {}]
  %s6 = inlined_call_operand.vmem [shape: f32[1,64], index: 6, kind: input, shape index: {}]
  %s7 = inlined_call_operand.hbm [shape: bf16[64,64], index: 7, kind: input, shape index: {}]
  %s8 = inlined_call_operand.vmem [shape: f32[1,64], index: 8, kind: input, shape index: {}]
  %s9 = inlined_call_operand.vmem [shape: bf16[64,128], index: 9, kind: input, shape index: {}]
  %s10 = inlined_call_operand.vmem [shape: f32[1,128], index: 10, kind: input, shape index: {}]
  %s11 = inlined_call_operand.vmem [shape: f32[16,4], index: 11, kind: output, shape index: {}]
  %s12 = sld [smem:[#allocation0]]
  $region105: #{tpu_custom_call.1} parent=0
    _
  %s14 = ssub.s32 1, %s12
  %s15 = scalar_select 0, %s14, %s12
  $region1: #{tpu_custom_call.1} parent=0
    #allocation2 [shape = 'u8[4096]{0}', space=vmem, size = 0x1000, scoped, tag = 'input window, operand 0']
    #allocation3 [shape = 's32[2]{0}', space=sflag, size = 0x8, scoped, tag = 'scoped memory for tpu_custom_call.1']
    #allocation4 [shape = 'u8[4096]{0}', space=vmem, size = 0x1000, scoped, tag = 'input window, operand 1']
    #allocation5 [shape = 's32[2]{0}', space=sflag, size = 0x8, scoped, tag = 'scoped memory for tpu_custom_call.1']
    #allocation6 [shape = 'u8[8192]{0}', space=vmem, size = 0x2000, scoped, tag = 'input window, operand 2, single buffered']
    #allocation7 [shape = 'u8[8192]{0}', space=vmem, size = 0x2000, scoped, tag = 'input window, operand 3, single buffered']
    #allocation8 [shape = 's32[1]{0}', space=sflag, size = 0x4, scoped, tag = 'scoped memory for tpu_custom_call.1']
    #allocation9 [shape = 'u8[8192]{0}', space=vmem, size = 0x2000, scoped, tag = 'input window, operand 4, single buffered']
    #allocation10 [shape = 'u8[8192]{0}', space=vmem, size = 0x2000, scoped, tag = 'input window, operand 5, single buffered']
    #allocation11 [shape = 's32[1]{0}', space=sflag, size = 0x4, scoped, tag = 'scoped memory for tpu_custom_call.1']
    #allocation12 [shape = 'u8[16384]{0}', space=vmem, size = 0x4000, scoped, tag = 'input window, operand 7, single buffered']
    %16 = vsyncpa [#allocation3], 0
    %s17 = scalar_lea.sflag [#allocation3], 1
    %18 = vsyncpa %s17, 0
    %19 = vsyncpa [#allocation5], 0
    %s20 = scalar_lea.sflag [#allocation5], 1
    %21 = vsyncpa %s20, 0
    %22 = vsyncpa [#allocation8], 0
    %23 = vsyncpa [#allocation11], 0
    loop: start=0, step=1, limit=4
    $region2: #{tpu_custom_call.1} parent=1 // loop_pre_header
      _
    $region3: #{tpu_custom_call.1} parent=1 // loop_header
      %s25 = sphi 0, %s29
      %p26 = scmp.ge.s32.totalorder %s25, 4
      %s35 = sphi 0, %s37
      %s38 = sphi 0, %s35
      %s39 = sphi 0, %s38
      %s55 = sphi 0, %s39
      %s61 = sphi 0, %s63
      %s64 = sphi 0, %s61
      %s65 = sphi 0, %s64
      %s81 = sphi 0, %s65
      %s85 = sphi 0, %s85
      %s87 = sphi 0, %s85
      %s88 = sphi 0, %s87
      %s102 = sphi 0, %s88
      %s106 = sphi 0, %s106
      %s108 = sphi 0, %s106
      %s109 = sphi 0, %s108
      %s123 = sphi 0, %s109
      %s127 = sphi 0, %s127
      %s129 = sphi 0, %s127
      %s130 = sphi 0, %s129
      %s144 = sphi 0, %s130
      %s148 = sphi 0, %s148
      %s150 = sphi 0, %s148
      %s151 = sphi 0, %s150
      %s165 = sphi 0, %s151
      %s169 = sphi 0, %s169
      %s171 = sphi 0, %s169
      %s172 = sphi 0, %s171
      %s186 = sphi 0, %s172
      %s190 = sphi 0, %s190
      %s192 = sphi 0, %s190
      %s193 = sphi 0, %s192
      %s207 = sphi 0, %s193
      %s211 = sphi 0, %s211
      %s213 = sphi 0, %s211
      %s214 = sphi 0, %s213
      %s228 = sphi 0, %s214
      %s232 = sphi 0, %s232
      %s234 = sphi 0, %s232
      %s235 = sphi 0, %s234
      %s249 = sphi 0, %s235
      %s253 = sphi 0, %s253
      %s255 = sphi 0, %s253
      %s256 = sphi 0, %s255
      %s270 = sphi 0, %s256
      %s276 = sphi 0, %s278
      %s279 = sphi 0, %s276
      %s280 = sphi 0, %s279
      %s296 = sphi 0, %s280
    $region4: #{tpu_custom_call.1} parent=1 // loop_header_branch
      %28 = sbr.rel (%p26) target = $region8
    $region5: #{tpu_custom_call.1} parent=1 // loop_body
      %s30 = ssub.s32 %s25, 1
      %s31 = ssub.s32 %s25, 2
      %s32 = sadd.s32 %s25, 1
      %s33 = ssub.s32 %s25, %s32
      %p34 = scmp.eq.s32.totalorder %s33, 0
      %s36 = sadd.s32 %s35, 1
      %s37 = scalar_select %p34, %s35, %s36
      %p40 = pneg %p34
      %p41 = scmp.eq.s32.totalorder %s25, 1
      %p42 = por %p40, %p41
      %p43 = scmp.ne.s32.totalorder %s35, %s38
      %p44 = scmp.eq.s32.totalorder %s25, 0
      %p45 = por %p43, %p44
      %p46 = scmp.ne.s32.totalorder %s35, %s38
      %p47 = scmp.eq.s32.totalorder %s30, 1
      %p48 = por %p46, %p47
      %p49 = scmp.ne.s32.totalorder %s38, %s39
      %p50 = scmp.eq.s32.totalorder %s30, 0
      %p51 = por %p49, %p50
      %p52 = scmp.ne.s32.totalorder %s38, %s39
      %p53 = scmp.eq.s32.totalorder %s31, 1
      %p54 = por %p52, %p53
      %p56 = scmp.ne.s32.totalorder %s39, %s55
      %p57 = scmp.eq.s32.totalorder %s31, 0
      %p58 = por %p56, %p57
      %s59 = ssub.s32 %s25, %s32
      %p60 = scmp.eq.s32.totalorder %s59, 0
      %s62 = sadd.s32 %s61, 1
      %s63 = scalar_select %p60, %s61, %s62
      %p66 = pneg %p60
      %p67 = scmp.eq.s32.totalorder %s25, 1
      %p68 = por %p66, %p67
      %p69 = scmp.ne.s32.totalorder %s61, %s64
      %p70 = scmp.eq.s32.totalorder %s25, 0
      %p71 = por %p69, %p70
      %p72 = scmp.ne.s32.totalorder %s61, %s64
      %p73 = scmp.eq.s32.totalorder %s30, 1
      %p74 = por %p72, %p73
      %p75 = scmp.ne.s32.totalorder %s64, %s65
      %p76 = scmp.eq.s32.totalorder %s30, 0
      %p77 = por %p75, %p76
      %p78 = scmp.ne.s32.totalorder %s64, %s65
      %p79 = scmp.eq.s32.totalorder %s31, 1
      %p80 = por %p78, %p79
      %p82 = scmp.ne.s32.totalorder %s65, %s81
      %p83 = scmp.eq.s32.totalorder %s31, 0
      %p84 = por %p82, %p83
      %s86 = sadd.s32 %s85, 1
      %p89 = scmp.eq.s32.totalorder %s25, 1
      %p90 = scmp.ne.s32.totalorder %s85, %s87
      %p91 = scmp.eq.s32.totalorder %s25, 0
      %p92 = por %p90, %p91
      %p93 = scmp.ne.s32.totalorder %s85, %s87
      %p94 = scmp.eq.s32.totalorder %s30, 1
      %p95 = por %p93, %p94
      %p96 = scmp.ne.s32.totalorder %s87, %s88
      %p97 = scmp.eq.s32.totalorder %s30, 0
      %p98 = por %p96, %p97
      %p99 = scmp.ne.s32.totalorder %s87, %s88
      %p100 = scmp.eq.s32.totalorder %s31, 1
      %p101 = por %p99, %p100
      %p103 = scmp.ne.s32.totalorder %s88, %s102
      %p104 = scmp.eq.s32.totalorder %s31, 0
      %p105 = por %p103, %p104
      %s107 = sadd.s32 %s106, 1
      %p110 = scmp.eq.s32.totalorder %s25, 1
      %p111 = scmp.ne.s32.totalorder %s106, %s108
      %p112 = scmp.eq.s32.totalorder %s25, 0
      %p113 = por %p111, %p112
      %p114 = scmp.ne.s32.totalorder %s106, %s108
      %p115 = scmp.eq.s32.totalorder %s30, 1
      %p116 = por %p114, %p115
      %p117 = scmp.ne.s32.totalorder %s108, %s109
      %p118 = scmp.eq.s32.totalorder %s30, 0
      %p119 = por %p117, %p118
      %p120 = scmp.ne.s32.totalorder %s108, %s109
      %p121 = scmp.eq.s32.totalorder %s31, 1
      %p122 = por %p120, %p121
      %p124 = scmp.ne.s32.totalorder %s109, %s123
      %p125 = scmp.eq.s32.totalorder %s31, 0
      %p126 = por %p124, %p125
      %s128 = sadd.s32 %s127, 1
      %p131 = scmp.eq.s32.totalorder %s25, 1
      %p132 = scmp.ne.s32.totalorder %s127, %s129
      %p133 = scmp.eq.s32.totalorder %s25, 0
      %p134 = por %p132, %p133
      %p135 = scmp.ne.s32.totalorder %s127, %s129
      %p136 = scmp.eq.s32.totalorder %s30, 1
      %p137 = por %p135, %p136
      %p138 = scmp.ne.s32.totalorder %s129, %s130
      %p139 = scmp.eq.s32.totalorder %s30, 0
      %p140 = por %p138, %p139
      %p141 = scmp.ne.s32.totalorder %s129, %s130
      %p142 = scmp.eq.s32.totalorder %s31, 1
      %p143 = por %p141, %p142
      %p145 = scmp.ne.s32.totalorder %s130, %s144
      %p146 = scmp.eq.s32.totalorder %s31, 0
      %p147 = por %p145, %p146
      %s149 = sadd.s32 %s148, 1
      %p152 = scmp.eq.s32.totalorder %s25, 1
      %p153 = scmp.ne.s32.totalorder %s148, %s150
      %p154 = scmp.eq.s32.totalorder %s25, 0
      %p155 = por %p153, %p154
      %p156 = scmp.ne.s32.totalorder %s148, %s150
      %p157 = scmp.eq.s32.totalorder %s30, 1
      %p158 = por %p156, %p157
      %p159 = scmp.ne.s32.totalorder %s150, %s151
      %p160 = scmp.eq.s32.totalorder %s30, 0
      %p161 = por %p159, %p160
      %p162 = scmp.ne.s32.totalorder %s150, %s151
      %p163 = scmp.eq.s32.totalorder %s31, 1
      %p164 = por %p162, %p163
      %p166 = scmp.ne.s32.totalorder %s151, %s165
      %p167 = scmp.eq.s32.totalorder %s31, 0
      %p168 = por %p166, %p167
      %s170 = sadd.s32 %s169, 1
      %p173 = scmp.eq.s32.totalorder %s25, 1
      %p174 = scmp.ne.s32.totalorder %s169, %s171
      %p175 = scmp.eq.s32.totalorder %s25, 0
      %p176 = por %p174, %p175
      %p177 = scmp.ne.s32.totalorder %s169, %s171
      %p178 = scmp.eq.s32.totalorder %s30, 1
      %p179 = por %p177, %p178
      %p180 = scmp.ne.s32.totalorder %s171, %s172
      %p181 = scmp.eq.s32.totalorder %s30, 0
      %p182 = por %p180, %p181
      %p183 = scmp.ne.s32.totalorder %s171, %s172
      %p184 = scmp.eq.s32.totalorder %s31, 1
      %p185 = por %p183, %p184
      %p187 = scmp.ne.s32.totalorder %s172, %s186
      %p188 = scmp.eq.s32.totalorder %s31, 0
      %p189 = por %p187, %p188
      %s191 = sadd.s32 %s190, 1
      %p194 = scmp.eq.s32.totalorder %s25, 1
      %p195 = scmp.ne.s32.totalorder %s190, %s192
      %p196 = scmp.eq.s32.totalorder %s25, 0
      %p197 = por %p195, %p196
      %p198 = scmp.ne.s32.totalorder %s190, %s192
      %p199 = scmp.eq.s32.totalorder %s30, 1
      %p200 = por %p198, %p199
      %p201 = scmp.ne.s32.totalorder %s192, %s193
      %p202 = scmp.eq.s32.totalorder %s30, 0
      %p203 = por %p201, %p202
      %p204 = scmp.ne.s32.totalorder %s192, %s193
      %p205 = scmp.eq.s32.totalorder %s31, 1
      %p206 = por %p204, %p205
      %p208 = scmp.ne.s32.totalorder %s193, %s207
      %p209 = scmp.eq.s32.totalorder %s31, 0
      %p210 = por %p208, %p209
      %s212 = sadd.s32 %s211, 1
      %p215 = scmp.eq.s32.totalorder %s25, 1
      %p216 = scmp.ne.s32.totalorder %s211, %s213
      %p217 = scmp.eq.s32.totalorder %s25, 0
      %p218 = por %p216, %p217
      %p219 = scmp.ne.s32.totalorder %s211, %s213
      %p220 = scmp.eq.s32.totalorder %s30, 1
      %p221 = por %p219, %p220
      %p222 = scmp.ne.s32.totalorder %s213, %s214
      %p223 = scmp.eq.s32.totalorder %s30, 0
      %p224 = por %p222, %p223
      %p225 = scmp.ne.s32.totalorder %s213, %s214
      %p226 = scmp.eq.s32.totalorder %s31, 1
      %p227 = por %p225, %p226
      %p229 = scmp.ne.s32.totalorder %s214, %s228
      %p230 = scmp.eq.s32.totalorder %s31, 0
      %p231 = por %p229, %p230
      %s233 = sadd.s32 %s232, 1
      %p236 = scmp.eq.s32.totalorder %s25, 1
      %p237 = scmp.ne.s32.totalorder %s232, %s234
      %p238 = scmp.eq.s32.totalorder %s25, 0
      %p239 = por %p237, %p238
      %p240 = scmp.ne.s32.totalorder %s232, %s234
      %p241 = scmp.eq.s32.totalorder %s30, 1
      %p242 = por %p240, %p241
      %p243 = scmp.ne.s32.totalorder %s234, %s235
      %p244 = scmp.eq.s32.totalorder %s30, 0
      %p245 = por %p243, %p244
      %p246 = scmp.ne.s32.totalorder %s234, %s235
      %p247 = scmp.eq.s32.totalorder %s31, 1
      %p248 = por %p246, %p247
      %p250 = scmp.ne.s32.totalorder %s235, %s249
      %p251 = scmp.eq.s32.totalorder %s31, 0
      %p252 = por %p250, %p251
      %s254 = sadd.s32 %s253, 1
      %p257 = scmp.eq.s32.totalorder %s25, 1
      %p258 = scmp.ne.s32.totalorder %s253, %s255
      %p259 = scmp.eq.s32.totalorder %s25, 0
      %p260 = por %p258, %p259
      %p261 = scmp.ne.s32.totalorder %s253, %s255
      %p262 = scmp.eq.s32.totalorder %s30, 1
      %p263 = por %p261, %p262
      %p264 = scmp.ne.s32.totalorder %s255, %s256
      %p265 = scmp.eq.s32.totalorder %s30, 0
      %p266 = por %p264, %p265
      %p267 = scmp.ne.s32.totalorder %s255, %s256
      %p268 = scmp.eq.s32.totalorder %s31, 1
      %p269 = por %p267, %p268
      %p271 = scmp.ne.s32.totalorder %s256, %s270
      %p272 = scmp.eq.s32.totalorder %s31, 0
      %p273 = por %p271, %p272
      %s274 = ssub.s32 %s25, %s32
      %p275 = scmp.eq.s32.totalorder %s274, 0
      %s277 = sadd.s32 %s276, 1
      %s278 = scalar_select %p275, %s276, %s277
      %p281 = pneg %p275
      %p282 = scmp.eq.s32.totalorder %s25, 1
      %p283 = por %p281, %p282
      %p284 = scmp.ne.s32.totalorder %s276, %s279
      %p285 = scmp.eq.s32.totalorder %s25, 0
      %p286 = por %p284, %p285
      %p287 = scmp.ne.s32.totalorder %s276, %s279
      %p288 = scmp.eq.s32.totalorder %s30, 1
      %p289 = por %p287, %p288
      %p290 = scmp.ne.s32.totalorder %s279, %s280
      %p291 = scmp.eq.s32.totalorder %s30, 0
      %p292 = por %p290, %p291
      %p293 = scmp.ne.s32.totalorder %s279, %s280
      %p294 = scmp.eq.s32.totalorder %s31, 1
      %p295 = por %p293, %p294
      %p297 = scmp.ne.s32.totalorder %s280, %s296
      %p298 = scmp.eq.s32.totalorder %s31, 0
      %p299 = por %p297, %p298
      %p300 = scmp.le.s32.totalorder 1, %s25
      %p301 = scmp.lt.s32.totalorder %s25, 3
      %p302 = pnand %p300, %p301
      %p303 = pneg %p302
      // Predicated region
      $region9: #{tpu_custom_call.1} parent=5 // pred_check
        _
      $region10: #{tpu_custom_call.1} parent=5 // pred_check_branch
        %305 = sbr.rel (%p302) target = $region12
      $region11: #{tpu_custom_call.1} parent=5 // pred_region
        %s306 = ssub.s32 %s25, 1
        // Predicated region
        $region13: #{tpu_custom_call.1} parent=11 // pred_check
          %p307 = pneg %p98
        $region14: #{tpu_custom_call.1} parent=11 // pred_check_branch
          %309 = sbr.rel (%p307) target = $region16
        $region15: #{tpu_custom_call.1} parent=11 // pred_region
          %s311 = ssub.s32 256, 256
          %312 = vsyncadd [#allocation5], %s311
          %s313 = sshll.u32 [#allocation6], 4
          %s314 = int_to_ptr.vmem [resolvable:$true] %s313
          %319 = dma.hbm_to_vmem [thread:$0]  %s2, 256, %s314, [#allocation5], 64, 64, 4
        $region16: #{tpu_custom_call.1} parent=11 // pred_fallthru
          _
        // Predicated region
        $region17: #{tpu_custom_call.1} parent=11 // pred_check
          %p320 = pneg %p119
        $region18: #{tpu_custom_call.1} parent=11 // pred_check_branch
          %322 = sbr.rel (%p320) target = $region20
        $region19: #{tpu_custom_call.1} parent=11 // pred_region
          %s324 = ssub.s32 256, 256
          %325 = vsyncadd [#allocation8], %s324
          %s326 = sshll.u32 [#allocation7], 4
          %s327 = int_to_ptr.vmem [resolvable:$true] %s326
          %332 = dma.hbm_to_vmem [thread:$0]  %s3, 256, %s327, [#allocation8], 64, 64, 4
        $region20: #{tpu_custom_call.1} parent=11 // pred_fallthru
          _
        // Predicated region
        $region21: #{tpu_custom_call.1} parent=11 // pred_check
          %p333 = pneg %p140
        $region22: #{tpu_custom_call.1} parent=11 // pred_check_branch
          %335 = sbr.rel (%p333) target = $region24
        $region23: #{tpu_custom_call.1} parent=11 // pred_region
          %s337 = ssub.s32 256, 256
          %338 = vsyncadd [#allocation8], %s337
          %s339 = sshll.u32 [#allocation9], 4
          %s340 = int_to_ptr.vmem [resolvable:$true] %s339
          %345 = dma.hbm_to_vmem [thread:$0]  %s4, 256, %s340, [#allocation8], 64, 64, 4
        $region24: #{tpu_custom_call.1} parent=11 // pred_fallthru
          _
        // Predicated region
        $region25: #{tpu_custom_call.1} parent=11 // pred_check
          %p346 = pneg %p161
        $region26: #{tpu_custom_call.1} parent=11 // pred_check_branch
          %348 = sbr.rel (%p346) target = $region28
        $region27: #{tpu_custom_call.1} parent=11 // pred_region
          %s350 = ssub.s32 256, 256
          %351 = vsyncadd [#allocation11], %s350
          %s352 = sshll.u32 [#allocation10], 4
          %s353 = int_to_ptr.vmem [resolvable:$true] %s352
          %358 = dma.hbm_to_vmem [thread:$0]  %s5, 256, %s353, [#allocation11], 64, 64, 4
        $region28: #{tpu_custom_call.1} parent=11 // pred_fallthru
          _
        // Predicated region
        $region29: #{tpu_custom_call.1} parent=11 // pred_check
          %p359 = pneg %p182
        $region30: #{tpu_custom_call.1} parent=11 // pred_check_branch
          %361 = sbr.rel (%p359) target = $region32
        $region31: #{tpu_custom_call.1} parent=11 // pred_region
          _
        $region32: #{tpu_custom_call.1} parent=11 // pred_fallthru
          _
        // Predicated region
        $region33: #{tpu_custom_call.1} parent=11 // pred_check
          %p362 = pneg %p203
        $region34: #{tpu_custom_call.1} parent=11 // pred_check_branch
          %364 = sbr.rel (%p362) target = $region36
        $region35: #{tpu_custom_call.1} parent=11 // pred_region
          %s366 = ssub.s32 512, 512
          %367 = vsyncadd [#allocation11], %s366
          %s368 = sshll.u32 [#allocation12], 4
          %s369 = int_to_ptr.vmem [resolvable:$true] %s368
          %374 = dma.hbm_to_vmem [thread:$0]  %s7, 512, %s369, [#allocation11], 64, 64, 4
        $region36: #{tpu_custom_call.1} parent=11 // pred_fallthru
          _
        // Predicated region
        $region37: #{tpu_custom_call.1} parent=11 // pred_check
          %p375 = pneg %p224
        $region38: #{tpu_custom_call.1} parent=11 // pred_check_branch
          %377 = sbr.rel (%p375) target = $region40
        $region39: #{tpu_custom_call.1} parent=11 // pred_region
          _
        $region40: #{tpu_custom_call.1} parent=11 // pred_fallthru
          _
        // Predicated region
        $region41: #{tpu_custom_call.1} parent=11 // pred_check
          %p378 = pneg %p245
        $region42: #{tpu_custom_call.1} parent=11 // pred_check_branch
          %380 = sbr.rel (%p378) target = $region44
        $region43: #{tpu_custom_call.1} parent=11 // pred_region
          _
        $region44: #{tpu_custom_call.1} parent=11 // pred_fallthru
          _
        // Predicated region
        $region45: #{tpu_custom_call.1} parent=11 // pred_check
          %p381 = pneg %p266
        $region46: #{tpu_custom_call.1} parent=11 // pred_check_branch
          %383 = sbr.rel (%p381) target = $region48
        $region47: #{tpu_custom_call.1} parent=11 // pred_region
          _
        $region48: #{tpu_custom_call.1} parent=11 // pred_fallthru
          _
      $region12: #{tpu_custom_call.1} parent=5 // pred_fallthru
        _
      %p384 = scmp.lt.s32.totalorder %s25, 2
      // Predicated region
      $region49: #{tpu_custom_call.1} parent=5 // pred_check
        %p385 = pneg %p384
      $region50: #{tpu_custom_call.1} parent=5 // pred_check_branch
        %387 = sbr.rel (%p385) target = $region52
      $region51: #{tpu_custom_call.1} parent=5 // pred_region
        // Predicated region
        $region53: #{tpu_custom_call.1} parent=51 // pred_check
          %p388 = pneg %p45
        $region54: #{tpu_custom_call.1} parent=51 // pred_check_branch
          %390 = sbr.rel (%p388) target = $region56
        $region55: #{tpu_custom_call.1} parent=51 // pred_region
          %s391 = sand.u32 %s35, 1
          %s392 = scalar_lea.sflag [#allocation3], %s391
          %s393 = sand.u32 %s35, 1
          %s394 = smul.addr %s393, 4
          %s395 = scalar_lea.vmem [#allocation2], %s394
          %s397 = ssub.s32 64, 64
          %398 = vsyncadd %s392, %s397
          %s399 = smul.addr %s25, 64
          %s400 = scalar_lea.hbm %s0, %s399
          %s402 = sshll.u32 %s395, 4
          %s403 = int_to_ptr.vmem [resolvable:$true] %s402
          %405 = dma.hbm_to_vmem [thread:$0]  %s400, 64, %s403, %s392
        $region56: #{tpu_custom_call.1} parent=51 // pred_fallthru
          _
        // Predicated region
        $region57: #{tpu_custom_call.1} parent=51 // pred_check
          %p406 = pneg %p71
        $region58: #{tpu_custom_call.1} parent=51 // pred_check_branch
          %408 = sbr.rel (%p406) target = $region60
        $region59: #{tpu_custom_call.1} parent=51 // pred_region
          %s409 = sand.u32 %s25, 1
          %s410 = scalar_lea.sflag [#allocation5], %s409
          %s411 = sand.u32 %s61, 1
          %s412 = smul.addr %s411, 4
          %s413 = scalar_lea.vmem [#allocation4], %s412
          %s415 = ssub.s32 64, 64
          %416 = vsyncadd %s410, %s415
          %s417 = smul.addr %s25, 64
          %s418 = scalar_lea.hbm %s1, %s417
          %s420 = sshll.u32 %s413, 4
          %s421 = int_to_ptr.vmem [resolvable:$true] %s420
          %423 = dma.hbm_to_vmem [thread:$0]  %s418, 64, %s421, %s410
        $region60: #{tpu_custom_call.1} parent=51 // pred_fallthru
          _
      $region52: #{tpu_custom_call.1} parent=5 // pred_fallthru
        _
      %p424 = scmp.le.s32.totalorder 1, %s25
      %p425 = scmp.lt.s32.totalorder %s25, 3
      %p426 = pnand %p424, %p425
      %p427 = pneg %p426
      // Predicated region
      $region61: #{tpu_custom_call.1} parent=5 // pred_check
        _
      $region62: #{tpu_custom_call.1} parent=5 // pred_check_branch
        %429 = sbr.rel (%p426) target = $region64
      $region63: #{tpu_custom_call.1} parent=5 // pred_region
        %s430 = ssub.s32 %s25, 1
        %s431 = sand.u32 %s38, 1
        %s432 = scalar_lea.sflag [#allocation3], %s431
        %s433 = sand.u32 %s38, 1
        %s434 = smul.addr %s433, 4
        %s435 = scalar_lea.vmem [#allocation2], %s434
        // Predicated region
        $region65: #{tpu_custom_call.1} parent=63 // pred_check
          %p436 = pneg %p51
        $region66: #{tpu_custom_call.1} parent=63 // pred_check_branch
          %438 = sbr.rel (%p436) target = $region68
        $region67: #{tpu_custom_call.1} parent=63 // pred_region
          %439 = dma.done %s432, 64
        $region68: #{tpu_custom_call.1} parent=63 // pred_fallthru
          _
        %s440 = sand.u32 %s30, 1
        %s441 = scalar_lea.sflag [#allocation5], %s440
        %s442 = sand.u32 %s64, 1
        %s443 = smul.addr %s442, 4
        %s444 = scalar_lea.vmem [#allocation4], %s443
        // Predicated region
        $region69: #{tpu_custom_call.1} parent=63 // pred_check
          %p445 = pneg %p77
        $region70: #{tpu_custom_call.1} parent=63 // pred_check_branch
          %447 = sbr.rel (%p445) target = $region72
        $region71: #{tpu_custom_call.1} parent=63 // pred_region
          %448 = dma.done %s441, 64
        $region72: #{tpu_custom_call.1} parent=63 // pred_fallthru
          _
        // Predicated region
        $region73: #{tpu_custom_call.1} parent=63 // pred_check
          %p449 = pneg %p98
        $region74: #{tpu_custom_call.1} parent=63 // pred_check_branch
          %451 = sbr.rel (%p449) target = $region76
        $region75: #{tpu_custom_call.1} parent=63 // pred_region
          %452 = dma.done [#allocation5], 256
        $region76: #{tpu_custom_call.1} parent=63 // pred_fallthru
          _
        // Predicated region
        $region77: #{tpu_custom_call.1} parent=63 // pred_check
          %p453 = pneg %p119
        $region78: #{tpu_custom_call.1} parent=63 // pred_check_branch
          %455 = sbr.rel (%p453) target = $region80
        $region79: #{tpu_custom_call.1} parent=63 // pred_region
          %456 = dma.done [#allocation8], 256
        $region80: #{tpu_custom_call.1} parent=63 // pred_fallthru
          _
        // Predicated region
        $region81: #{tpu_custom_call.1} parent=63 // pred_check
          %p457 = pneg %p140
        $region82: #{tpu_custom_call.1} parent=63 // pred_check_branch
          %459 = sbr.rel (%p457) target = $region84
        $region83: #{tpu_custom_call.1} parent=63 // pred_region
          %460 = dma.done [#allocation8], 256
        $region84: #{tpu_custom_call.1} parent=63 // pred_fallthru
          _
        // Predicated region
        $region85: #{tpu_custom_call.1} parent=63 // pred_check
          %p461 = pneg %p161
        $region86: #{tpu_custom_call.1} parent=63 // pred_check_branch
          %463 = sbr.rel (%p461) target = $region88
        $region87: #{tpu_custom_call.1} parent=63 // pred_region
          %464 = dma.done [#allocation11], 256
        $region88: #{tpu_custom_call.1} parent=63 // pred_fallthru
          _
        // Predicated region
        $region89: #{tpu_custom_call.1} parent=63 // pred_check
          %p465 = pneg %p203
        $region90: #{tpu_custom_call.1} parent=63 // pred_check_branch
          %467 = sbr.rel (%p465) target = $region92
        $region91: #{tpu_custom_call.1} parent=63 // pred_region
          %468 = dma.done [#allocation11], 512
        $region92: #{tpu_custom_call.1} parent=63 // pred_fallthru
          _
        %s469 = sand.u32 %s38, 1
        %s470 = scalar_lea.sflag [#allocation3], %s469
        %s471 = sand.u32 %s38, 1
        %s472 = smul.addr %s471, 4
        %s473 = scalar_lea.vmem [#allocation2], %s472
        %p474 = pneg %p51
        %p475 = pneg %p48
        %s476 = sand.u32 %s30, 1
        %s477 = scalar_lea.sflag [#allocation5], %s476
        %s478 = sand.u32 %s64, 1
        %s479 = smul.addr %s478, 4
        %s480 = scalar_lea.vmem [#allocation4], %s479
        %p481 = pneg %p77
        %p482 = pneg %p74
        %p483 = pneg %p98
        %p484 = pneg %p95
        %p485 = pneg %p119
        %p486 = pneg %p116
        %p487 = pneg %p140
        %p488 = pneg %p137
        %p489 = pneg %p161
        %p490 = pneg %p158
        %p491 = pneg %p182
        %p492 = pneg %p179
        %p493 = pneg %p203
        %p494 = pneg %p200
        %p495 = pneg %p224
        %p496 = pneg %p221
        %p497 = pneg %p245
        %p498 = pneg %p242
        %p499 = pneg %p266
        %p500 = pneg %p263
        %p501 = pneg %p292
        %p502 = pneg %p289
        %p503 = scmp.lt.s32.totalorder %s30, 1
        %s504 = scalar_select %p503, %s30, 1
        %s505 = smul.addr %s504, 8
        %s506 = scalar_lea.vmem %s11, %s505
        %p507 = scmp.lt.s32.totalorder %s30, 1
        %s508 = scalar_select %p507, %s30, 1
        %s509 = smul.addr %s508, 8
        %s510 = scalar_lea.vmem %s11, %s509
        %v512 = vld [vmem:[%s435] sm:$0xf]
        %v513 = vld [vmem:[%s444] sm:$0xf]
        %v514 = vunpack.c.l.bf16 %v512
        %v515 = vunpack.c.l.bf16 %v513
        %v516 = vsub.f32 %v514, %v515
        %v517 = vand.u32 2147483647, %v516
        %v518 = vmul.f32 %v514, %v515
        %v519 = vld [vmem:[#allocation6] sm:$0xf]
        %v520 = vld [vmem:[#allocation6 + $0x4] sm:$0xf]
        %v521 = vld [vmem:[#allocation6 + $0x8] sm:$0xf]
        %v522 = vld [vmem:[#allocation6 + $0xc] sm:$0xf]
        %v523 = vld [vmem:[#allocation7] sm:$0xf]
        %v524 = vld [vmem:[#allocation7 + $0x4] sm:$0xf]
        %v525 = vld [vmem:[#allocation7 + $0x8] sm:$0xf]
        %v526 = vld [vmem:[#allocation7 + $0xc] sm:$0xf]
        %v531 = vunpack.c.l.b16 %v523
        %v532 = vunpack.c.l.b16 %v524
        %v533 = vunpack.c.l.b16 %v525
        %v534 = vunpack.c.l.b16 %v526
        %v535 = vpack.c.b16 %v532, %v531
        %v536 = vpack.c.b16 %v534, %v533
        %vm539 = vcmask 261120
        %v541 = vsel %vm539, %v513, 0
        %543 = vmatprep.subr.bf16.mxu0 0
        %544 = vmatpush1.bf16.msra.mxu0 %v535
        %545 = vmatprep.subr.bf16.mxu0 0
        %546 = vmatpush1.bf16.msra.mxu0 %v536
        %547 = vmatprep.subr.bf16.mxu0 0
        %548 = vmatpush1.bf16.msra.mxu0 0
        %549 = vmatprep.subr.bf16.mxu0 0
        %550 = vmatpush1.bf16.msra.mxu0 0
        %551 = vmatprep.subr.bf16.mxu0 0
        %552 = vmatpush1.bf16.msra.mxu0 0
        %553 = vmatprep.subr.bf16.mxu0 0
        %554 = vmatpush1.bf16.msra.mxu0 0
        %555 = vmatprep.subr.bf16.mxu0 0
        %556 = vmatpush1.bf16.msra.mxu0 0
        %557 = vmatprep.subr.bf16.mxu0 0
        %558 = vmatpush1.bf16.msra.mxu0 0
        %559 = vmatprep.subr.bf16.mxu0 0
        %560 = vmatpush1.bf16.msra.mxu0 0
        %561 = vmatprep.subr.bf16.mxu0 0
        %562 = vmatpush1.bf16.msra.mxu0 0
        %563 = vmatprep.subr.bf16.mxu0 0
        %564 = vmatpush1.bf16.msra.mxu0 0
        %565 = vmatprep.subr.bf16.mxu0 0
        %566 = vmatpush1.bf16.msra.mxu0 0
        %567 = vmatprep.subr.bf16.mxu0 0
        %568 = vmatpush1.bf16.msra.mxu0 0
        %569 = vmatprep.subr.bf16.mxu0 0
        %570 = vmatpush1.bf16.msra.mxu0 0
        %571 = vmatprep.subr.bf16.mxu0 0
        %572 = vmatpush1.bf16.msra.mxu0 0
        %573 = vmatprep.subr.bf16.mxu0 0
        %574 = vmatpush1.bf16.msra.mxu0 0
        %575 = vmatprep.mubr.bf16.mxu0 0
        %576 = vmatmul.mubr.bf16.gmra.mrb[0].mxu0 %v541
        %v577 = vpop.f32.mrb[0].mxu0
        %v578 = vadd.f32 0.0, %v577
        %v579 = vpop.f32.mrb[0].mxu0
        %v580 = vpop.f32.mrb[0].mxu0
        %v581 = vpop.f32.mrb[0].mxu0
        %582 = vdwg.mxu0
        %v587 = vunpack.c.l.b16 %v519
        %v588 = vunpack.c.l.b16 %v520
        %v589 = vunpack.c.l.b16 %v521
        %v590 = vunpack.c.l.b16 %v522
        %v591 = vpack.c.b16 %v588, %v587
        %v592 = vpack.c.b16 %v590, %v589
        %v596 = vsel %vm539, %v512, 0
        %598 = vmatprep.subr.bf16.mxu0 0
        %599 = vmatpush1.bf16.msra.mxu0 %v591
        %600 = vmatprep.subr.bf16.mxu0 0
        %601 = vmatpush1.bf16.msra.mxu0 %v592
        %602 = vmatprep.subr.bf16.mxu0 0
        %603 = vmatpush1.bf16.msra.mxu0 0
        %604 = vmatprep.subr.bf16.mxu0 0
        %605 = vmatpush1.bf16.msra.mxu0 0
        %606 = vmatprep.subr.bf16.mxu0 0
        %607 = vmatpush1.bf16.msra.mxu0 0
        %608 = vmatprep.subr.bf16.mxu0 0
        %609 = vmatpush1.bf16.msra.mxu0 0
        %610 = vmatprep.subr.bf16.mxu0 0
        %611 = vmatpush1.bf16.msra.mxu0 0
        %612 = vmatprep.subr.bf16.mxu0 0
        %613 = vmatpush1.bf16.msra.mxu0 0
        %614 = vmatprep.subr.bf16.mxu0 0
        %615 = vmatpush1.bf16.msra.mxu0 0
        %616 = vmatprep.subr.bf16.mxu0 0
        %617 = vmatpush1.bf16.msra.mxu0 0
        %618 = vmatprep.subr.bf16.mxu0 0
        %619 = vmatpush1.bf16.msra.mxu0 0
        %620 = vmatprep.subr.bf16.mxu0 0
        %621 = vmatpush1.bf16.msra.mxu0 0
        %622 = vmatprep.subr.bf16.mxu0 0
        %623 = vmatpush1.bf16.msra.mxu0 0
        %624 = vmatprep.subr.bf16.mxu0 0
        %625 = vmatpush1.bf16.msra.mxu0 0
        %626 = vmatprep.subr.bf16.mxu0 0
        %627 = vmatpush1.bf16.msra.mxu0 0
        %628 = vmatprep.subr.bf16.mxu0 0
        %629 = vmatpush1.bf16.msra.mxu0 0
        %630 = vmatprep.mubr.bf16.mxu0 0
        %631 = vmatmul.mubr.bf16.gmra.mrb[0].mxu0 %v596
        %v632 = vpop.f32.mrb[0].mxu0
        %v633 = vadd.f32 %v578, %v632
        %v634 = vpop.f32.mrb[0].mxu0
        %v635 = vpop.f32.mrb[0].mxu0
        %v636 = vpop.f32.mrb[0].mxu0
        %637 = vdwg.mxu0
        %v638 = vpack.c.bf16 %v517, %v517
        %v639 = vld [vmem:[#allocation9] sm:$0xf]
        %v640 = vld [vmem:[#allocation9 + $0x4] sm:$0xf]
        %v641 = vld [vmem:[#allocation9 + $0x8] sm:$0xf]
        %v642 = vld [vmem:[#allocation9 + $0xc] sm:$0xf]
        %v647 = vunpack.c.l.b16 %v639
        %v648 = vunpack.c.l.b16 %v640
        %v649 = vunpack.c.l.b16 %v641
        %v650 = vunpack.c.l.b16 %v642
        %v651 = vpack.c.b16 %v648, %v647
        %v652 = vpack.c.b16 %v650, %v649
        %v656 = vsel %vm539, %v638, 0
        %658 = vmatprep.subr.bf16.mxu0 0
        %659 = vmatpush1.bf16.msra.mxu0 %v651
        %660 = vmatprep.subr.bf16.mxu0 0
        %661 = vmatpush1.bf16.msra.mxu0 %v652
        %662 = vmatprep.subr.bf16.mxu0 0
        %663 = vmatpush1.bf16.msra.mxu0 0
        %664 = vmatprep.subr.bf16.mxu0 0
        %665 = vmatpush1.bf16.msra.mxu0 0
        %666 = vmatprep.subr.bf16.mxu0 0
        %667 = vmatpush1.bf16.msra.mxu0 0
        %668 = vmatprep.subr.bf16.mxu0 0
        %669 = vmatpush1.bf16.msra.mxu0 0
        %670 = vmatprep.subr.bf16.mxu0 0
        %671 = vmatpush1.bf16.msra.mxu0 0
        %672 = vmatprep.subr.bf16.mxu0 0
        %673 = vmatpush1.bf16.msra.mxu0 0
        %674 = vmatprep.subr.bf16.mxu0 0
        %675 = vmatpush1.bf16.msra.mxu0 0
        %676 = vmatprep.subr.bf16.mxu0 0
        %677 = vmatpush1.bf16.msra.mxu0 0
        %678 = vmatprep.subr.bf16.mxu0 0
        %679 = vmatpush1.bf16.msra.mxu0 0
        %680 = vmatprep.subr.bf16.mxu0 0
        %681 = vmatpush1.bf16.msra.mxu0 0
        %682 = vmatprep.subr.bf16.mxu0 0
        %683 = vmatpush1.bf16.msra.mxu0 0
        %684 = vmatprep.subr.bf16.mxu0 0
        %685 = vmatpush1.bf16.msra.mxu0 0
        %686 = vmatprep.subr.bf16.mxu0 0
        %687 = vmatpush1.bf16.msra.mxu0 0
        %688 = vmatprep.subr.bf16.mxu0 0
        %689 = vmatpush1.bf16.msra.mxu0 0
        %690 = vmatprep.mubr.bf16.mxu0 0
        %691 = vmatmul.mubr.bf16.gmra.mrb[0].mxu0 %v656
        %v692 = vpop.f32.mrb[0].mxu0
        %v693 = vadd.f32 0.0, %v692
        %v694 = vpop.f32.mrb[0].mxu0
        %v695 = vpop.f32.mrb[0].mxu0
        %v696 = vpop.f32.mrb[0].mxu0
        %697 = vdwg.mxu0
        %v698 = vadd.f32 %v633, %v693
        %v699 = vpack.c.bf16 %v518, %v518
        %v700 = vld [vmem:[#allocation10] sm:$0xf]
        %v701 = vld [vmem:[#allocation10 + $0x4] sm:$0xf]
        %v702 = vld [vmem:[#allocation10 + $0x8] sm:$0xf]
        %v703 = vld [vmem:[#allocation10 + $0xc] sm:$0xf]
        %v708 = vunpack.c.l.b16 %v700
        %v709 = vunpack.c.l.b16 %v701
        %v710 = vunpack.c.l.b16 %v702
        %v711 = vunpack.c.l.b16 %v703
        %v712 = vpack.c.b16 %v709, %v708
        %v713 = vpack.c.b16 %v711, %v710
        %v717 = vsel %vm539, %v699, 0
        %719 = vmatprep.subr.bf16.mxu0 0
        %720 = vmatpush1.bf16.msra.mxu0 %v712
        %721 = vmatprep.subr.bf16.mxu0 0
        %722 = vmatpush1.bf16.msra.mxu0 %v713
        %723 = vmatprep.subr.bf16.mxu0 0
        %724 = vmatpush1.bf16.msra.mxu0 0
        %725 = vmatprep.subr.bf16.mxu0 0
        %726 = vmatpush1.bf16.msra.mxu0 0
        %727 = vmatprep.subr.bf16.mxu0 0
        %728 = vmatpush1.bf16.msra.mxu0 0
        %729 = vmatprep.subr.bf16.mxu0 0
        %730 = vmatpush1.bf16.msra.mxu0 0
        %731 = vmatprep.subr.bf16.mxu0 0
        %732 = vmatpush1.bf16.msra.mxu0 0
        %733 = vmatprep.subr.bf16.mxu0 0
        %734 = vmatpush1.bf16.msra.mxu0 0
        %735 = vmatprep.subr.bf16.mxu0 0
        %736 = vmatpush1.bf16.msra.mxu0 0
        %737 = vmatprep.subr.bf16.mxu0 0
        %738 = vmatpush1.bf16.msra.mxu0 0
        %739 = vmatprep.subr.bf16.mxu0 0
        %740 = vmatpush1.bf16.msra.mxu0 0
        %741 = vmatprep.subr.bf16.mxu0 0
        %742 = vmatpush1.bf16.msra.mxu0 0
        %743 = vmatprep.subr.bf16.mxu0 0
        %744 = vmatpush1.bf16.msra.mxu0 0
        %745 = vmatprep.subr.bf16.mxu0 0
        %746 = vmatpush1.bf16.msra.mxu0 0
        %747 = vmatprep.subr.bf16.mxu0 0
        %748 = vmatpush1.bf16.msra.mxu0 0
        %749 = vmatprep.subr.bf16.mxu0 0
        %750 = vmatpush1.bf16.msra.mxu0 0
        %751 = vmatprep.mubr.bf16.mxu0 0
        %752 = vmatmul.mubr.bf16.gmra.mrb[0].mxu0 %v717
        %v753 = vpop.f32.mrb[0].mxu0
        %v754 = vadd.f32 0.0, %v753
        %v755 = vpop.f32.mrb[0].mxu0
        %v756 = vpop.f32.mrb[0].mxu0
        %v757 = vpop.f32.mrb[0].mxu0
        %758 = vdwg.mxu0
        %v759 = vadd.f32 %v698, %v754
        %v760 = vld [vmem:[%s6] sm:$0x1]
        %v762 = vlaneseq
        %v763 = vshrl.u32 %v762, 7
        %v764 = vsub.s32 0, %v763
        %v765 = vrot.slane %v760, %v764
        %v767 = vadd.f32 %v759, %v765
        %v768 = vmax.f32 %v767, 0.0
        %v769 = vpack.c.bf16 %v768, %v768
        %v770 = vld [vmem:[#allocation12] sm:$0xf]
        %v771 = vld [vmem:[#allocation12 + $0x4] sm:$0xf]
        %v772 = vld [vmem:[#allocation12 + $0x8] sm:$0xf]
        %v773 = vld [vmem:[#allocation12 + $0xc] sm:$0xf]
        %v774 = vld [vmem:[#allocation12 + $0x10] sm:$0xf]
        %v775 = vld [vmem:[#allocation12 + $0x14] sm:$0xf]
        %v776 = vld [vmem:[#allocation12 + $0x18] sm:$0xf]
        %v777 = vld [vmem:[#allocation12 + $0x1c] sm:$0xf]
        %v778 = vld [vmem:[%s8] sm:$0x1]
        %v780 = vlaneseq
        %v781 = vshrl.u32 %v780, 7
        %v782 = vsub.s32 0, %v781
        %v783 = vrot.slane %v778, %v782
        %v793 = vunpack.c.l.b16 %v770
        %v794 = vunpack.c.l.b16 %v771
        %v795 = vunpack.c.l.b16 %v772
        %v796 = vunpack.c.l.b16 %v773
        %v797 = vunpack.c.l.b16 %v774
        %v798 = vunpack.c.l.b16 %v775
        %v799 = vunpack.c.l.b16 %v776
        %v800 = vunpack.c.l.b16 %v777
        %v801 = vpack.c.b16 %v794, %v793
        %v802 = vpack.c.b16 %v796, %v795
        %v803 = vpack.c.b16 %v798, %v797
        %v804 = vpack.c.b16 %v800, %v799
        %vm809 = vcmask 523264
        %v811 = vsel %vm809, %v769, 0
        %813 = vmatprep.subr.bf16.mxu0 0
        %814 = vmatpush1.bf16.msra.mxu0 %v801
        %815 = vmatprep.subr.bf16.mxu0 0
        %816 = vmatpush1.bf16.msra.mxu0 %v802
        %817 = vmatprep.subr.bf16.mxu0 0
        %818 = vmatpush1.bf16.msra.mxu0 %v803
        %819 = vmatprep.subr.bf16.mxu0 0
        %820 = vmatpush1.bf16.msra.mxu0 %v804
        %821 = vmatprep.subr.bf16.mxu0 0
        %822 = vmatpush1.bf16.msra.mxu0 0
        %823 = vmatprep.subr.bf16.mxu0 0
        %824 = vmatpush1.bf16.msra.mxu0 0
        %825 = vmatprep.subr.bf16.mxu0 0
        %826 = vmatpush1.bf16.msra.mxu0 0
        %827 = vmatprep.subr.bf16.mxu0 0
        %828 = vmatpush1.bf16.msra.mxu0 0
        %829 = vmatprep.subr.bf16.mxu0 0
        %830 = vmatpush1.bf16.msra.mxu0 0
        %831 = vmatprep.subr.bf16.mxu0 0
        %832 = vmatpush1.bf16.msra.mxu0 0
        %833 = vmatprep.subr.bf16.mxu0 0
        %834 = vmatpush1.bf16.msra.mxu0 0
        %835 = vmatprep.subr.bf16.mxu0 0
        %836 = vmatpush1.bf16.msra.mxu0 0
        %837 = vmatprep.subr.bf16.mxu0 0
        %838 = vmatpush1.bf16.msra.mxu0 0
        %839 = vmatprep.subr.bf16.mxu0 0
        %840 = vmatpush1.bf16.msra.mxu0 0
        %841 = vmatprep.subr.bf16.mxu0 0
        %842 = vmatpush1.bf16.msra.mxu0 0
        %843 = vmatprep.subr.bf16.mxu0 0
        %844 = vmatpush1.bf16.msra.mxu0 0
        %845 = vmatprep.mubr.bf16.mxu0 0
        %846 = vmatmul.mubr.bf16.gmra.mrb[0].mxu0 %v811
        %v847 = vpop.f32.mrb[0].mxu0
        %v848 = vadd.f32 %v783, %v847
        %v849 = vpop.f32.mrb[0].mxu0
        %v850 = vpop.f32.mrb[0].mxu0
        %v851 = vpop.f32.mrb[0].mxu0
        %852 = vdwg.mxu0
        %v853 = vmax.f32 %v848, 0.0
        %v854 = vpack.c.bf16 %v853, %v853
        %v855 = vld [vmem:[%s9] sm:$0xf]
        %v856 = vld [vmem:[%s9 + $0x4] sm:$0xf]
        %v857 = vld [vmem:[%s9 + $0x8] sm:$0xf]
        %v858 = vld [vmem:[%s9 + $0xc] sm:$0xf]
        %v859 = vld [vmem:[%s9 + $0x10] sm:$0xf]
        %v860 = vld [vmem:[%s9 + $0x14] sm:$0xf]
        %v861 = vld [vmem:[%s9 + $0x18] sm:$0xf]
        %v862 = vld [vmem:[%s9 + $0x1c] sm:$0xf]
        %v863 = vld [vmem:[%s10] sm:$0x1]
        %v865 = vlaneseq
        %v866 = vshrl.u32 %v865, 7
        %v867 = vsub.s32 0, %v866
        %v868 = vrot.slane %v863, %v867
        %v878 = vunpack.c.l.b16 %v855
        %v879 = vunpack.c.l.b16 %v856
        %v880 = vunpack.c.l.b16 %v857
        %v881 = vunpack.c.l.b16 %v858
        %v882 = vunpack.c.l.b16 %v859
        %v883 = vunpack.c.l.b16 %v860
        %v884 = vunpack.c.l.b16 %v861
        %v885 = vunpack.c.l.b16 %v862
        %v886 = vpack.c.b16 %v879, %v878
        %v887 = vpack.c.b16 %v881, %v880
        %v888 = vpack.c.b16 %v883, %v882
        %v889 = vpack.c.b16 %v885, %v884
        %v895 = vsel %vm809, %v854, 0
        %897 = vmatprep.subr.bf16.mxu0 0
        %898 = vmatpush1.bf16.msra.mxu0 %v886
        %899 = vmatprep.subr.bf16.mxu0 0
        %900 = vmatpush1.bf16.msra.mxu0 %v887
        %901 = vmatprep.subr.bf16.mxu0 0
        %902 = vmatpush1.bf16.msra.mxu0 %v888
        %903 = vmatprep.subr.bf16.mxu0 0
        %904 = vmatpush1.bf16.msra.mxu0 %v889
        %905 = vmatprep.subr.bf16.mxu0 0
        %906 = vmatpush1.bf16.msra.mxu0 0
        %907 = vmatprep.subr.bf16.mxu0 0
        %908 = vmatpush1.bf16.msra.mxu0 0
        %909 = vmatprep.subr.bf16.mxu0 0
        %910 = vmatpush1.bf16.msra.mxu0 0
        %911 = vmatprep.subr.bf16.mxu0 0
        %912 = vmatpush1.bf16.msra.mxu0 0
        %913 = vmatprep.subr.bf16.mxu0 0
        %914 = vmatpush1.bf16.msra.mxu0 0
        %915 = vmatprep.subr.bf16.mxu0 0
        %916 = vmatpush1.bf16.msra.mxu0 0
        %917 = vmatprep.subr.bf16.mxu0 0
        %918 = vmatpush1.bf16.msra.mxu0 0
        %919 = vmatprep.subr.bf16.mxu0 0
        %920 = vmatpush1.bf16.msra.mxu0 0
        %921 = vmatprep.subr.bf16.mxu0 0
        %922 = vmatpush1.bf16.msra.mxu0 0
        %923 = vmatprep.subr.bf16.mxu0 0
        %924 = vmatpush1.bf16.msra.mxu0 0
        %925 = vmatprep.subr.bf16.mxu0 0
        %926 = vmatpush1.bf16.msra.mxu0 0
        %927 = vmatprep.subr.bf16.mxu0 0
        %928 = vmatpush1.bf16.msra.mxu0 0
        %929 = vmatprep.mubr.bf16.mxu0 0
        %930 = vmatmul.mubr.bf16.gmra.mrb[0].mxu0 %v895
        %v931 = vpop.f32.mrb[0].mxu0
        %v932 = vadd.f32 %v868, %v931
        %v933 = vpop.f32.mrb[0].mxu0
        %v934 = vpop.f32.mrb[0].mxu0
        %v935 = vpop.f32.mrb[0].mxu0
        %936 = vdwg.mxu0
        %vm937 = vcmask 31744
        %938 = vst.msk [vmem:[%s510] sm:$0xff] %vm937, %v932
        %p939 = scmp.lt.s32.totalorder %s30, 1
        %s940 = scalar_select %p939, %s30, 1
        %s941 = smul.addr %s940, 8
        %s942 = scalar_lea.vmem %s11, %s941
        // Predicated region
        $region93: #{tpu_custom_call.1} parent=63 // pred_check
          %p943 = pneg %p289
        $region94: #{tpu_custom_call.1} parent=63 // pred_check_branch
          %945 = sbr.rel (%p943) target = $region96
        $region95: #{tpu_custom_call.1} parent=63 // pred_region
          _
        $region96: #{tpu_custom_call.1} parent=63 // pred_fallthru
          _
      $region64: #{tpu_custom_call.1} parent=5 // pred_fallthru
        _
      %p946 = scmp.le.s32.totalorder 2, %s25
      // Predicated region
      $region97: #{tpu_custom_call.1} parent=5 // pred_check
        %p947 = pneg %p946
      $region98: #{tpu_custom_call.1} parent=5 // pred_check_branch
        %949 = sbr.rel (%p947) target = $region100
      $region99: #{tpu_custom_call.1} parent=5 // pred_region
        %s950 = ssub.s32 %s25, 2
        // Predicated region
        $region101: #{tpu_custom_call.1} parent=99 // pred_check
          %p951 = pneg %p295
        $region102: #{tpu_custom_call.1} parent=99 // pred_check_branch
          %953 = sbr.rel (%p951) target = $region104
        $region103: #{tpu_custom_call.1} parent=99 // pred_region
          %p954 = scmp.lt.s32.totalorder %s31, 1
          %s955 = scalar_select %p954, %s31, 1
          %s956 = smul.addr %s955, 8
          %s957 = scalar_lea.vmem %s11, %s956
        $region104: #{tpu_custom_call.1} parent=99 // pred_fallthru
          _
      $region100: #{tpu_custom_call.1} parent=5 // pred_fallthru
        _
    $region6: #{tpu_custom_call.1} parent=1 // loop_footer
      %s29 = sadd.s32 1, %s25
    $region7: #{tpu_custom_call.1} parent=1 // loop_footer_branch
      %24 = sbr.rel target = $region3
    $region8: #{tpu_custom_call.1} parent=1 // loop_exit
      _
    %958 = vsyncpa [#allocation3], 1
    %s959 = scalar_lea.sflag [#allocation3], 1
    %960 = vsyncpa %s959, 1
    %961 = vsyncpa [#allocation5], 1
    %s962 = scalar_lea.sflag [#allocation5], 1
    %963 = vsyncpa %s962, 1
    %964 = vsyncpa [#allocation8], 1
    %965 = vsyncpa [#allocation11], 1

</llo_original>
